<compile_context>
chip_gen: v7x
topology: tpu7x:2x2x1
jax: 0.10.0
libtpu: 0.0.40
codegen_flags: <defaults>
</compile_context>

<pallas_src>
import math
import numpy as np
import jax
import jax.numpy as jnp
from jax.experimental import pallas as pl
from jax.experimental.pallas import tpu as pltpu

COMPUTE_DTYPE = jnp.bfloat16


def masked_mm_kernel(x_ref, w_ref, o_ref):
    """o = x @ w, bf16 operands, f32 accumulation on the MXU."""
    o_ref[...] = jnp.dot(
        x_ref[...], w_ref[...], preferred_element_type=jnp.float32
    )


def prepare_masked_mlp(weight, mask, compute_dtype=COMPUTE_DTYPE):
    """One-time setup mirroring reinit_weight().

    Returns (weight_t, idx, k_pad):
      idx      : static host-side indices of kept input columns (mask != 0)
      weight_t : weight[:, idx].T -> (n_kept, out_size), cast to bf16 and
                 zero-padded along K to a multiple of 128 (zero rows add
                 nothing to the matmul).
      k_pad    : padded contraction length actually fed to the kernel.
    """
    mask_np = np.asarray(mask)
    idx = np.nonzero(mask_np != 0)[0]                      # static, setup-time
    n_kept = int(idx.shape[0])
    k_pad = max(128, ((n_kept + 127) // 128) * 128)

    w_t = jnp.take(weight, jnp.asarray(idx, dtype=jnp.int32), axis=1).T
    w_t = w_t.astype(compute_dtype)
    if k_pad != n_kept:
        w_t = jnp.pad(w_t, ((0, k_pad - n_kept), (0, 0)))
    return w_t, idx, k_pad


def masked_mlp_forward(x, weight_t, idx, k_pad, compute_dtype=COMPUTE_DTYPE):
    """MaskedMLP.forward: out = x[:, idx] @ weight_t  (f32 output)."""
    B, in_size = x.shape
    n_kept = int(idx.shape[0])
    Kw, N = weight_t.shape
    assert Kw == k_pad

    # Column prune == PyTorch's input_t[boolmask, :].t(); skipped when the
    # mask keeps every column (the module's default all-ones mask).
    if n_kept == in_size and np.array_equal(idx, np.arange(in_size)):
        x_pruned = x
    else:
        x_pruned = jnp.take(x, jnp.asarray(idx, dtype=jnp.int32), axis=1)
    x_pruned = x_pruned.astype(compute_dtype)
    if k_pad != n_kept:
        x_pruned = jnp.pad(x_pruned, ((0, 0), (0, k_pad - n_kept)))

    dsize = jnp.dtype(compute_dtype).itemsize
    cost = pl.CostEstimate(
        flops=2 * B * k_pad * N,
        transcendentals=0,
        bytes_accessed=B * k_pad * dsize + k_pad * N * dsize + B * N * 4,
    )

    return pl.pallas_call(
        masked_mm_kernel,
        out_shape=jax.ShapeDtypeStruct((B, N), jnp.float32),
        in_specs=[
            pl.BlockSpec((B, k_pad), lambda: (0, 0),
                         memory_space=pltpu.MemorySpace.VMEM),
            pl.BlockSpec((k_pad, N), lambda: (0, 0),
                         memory_space=pltpu.MemorySpace.VMEM),
        ],
        out_specs=pl.BlockSpec((B, N), lambda: (0, 0),
                               memory_space=pltpu.MemorySpace.VMEM),
        cost_estimate=cost,
        # TODO(synk): for realistic shapes (B >= 256, large K/N) add an
        # (M, N, K) grid: M/N "parallel" (v7x: 2 TCs), K innermost "arbitrary"
        # with a pl.when(k == 0) f32 scratch-accumulator init.  Tile budgets
        # (bf16, double-buffered):
        #   v5e: tm=128 (128x128 MXU), keep tiles under 16 MiB scoped VMEM
        #   v6e: tm=256, tn=512-1024, tk=1024+; raise vmem_limit_bytes ~64-100MB
        #   v7x: tm=256, tn=512-1024, tk=1024; 64 MiB physical / 32 MiB scoped
    )(x_pruned, weight_t)


if __name__ == "__main__":
    B, in_size, out_size = 8, 256, 128

    key = jax.random.PRNGKey(0)
    kx, kw = jax.random.split(key)

    x = jax.random.normal(kx, (B, in_size), dtype=jnp.float32)

    # Deterministic init mirroring reset_parameters():
    # kaiming_uniform_(a=sqrt(5)) -> U(-b, b) with b = 1/sqrt(in_size).
    bound = 1.0 / math.sqrt(in_size)
    weight = jax.random.uniform(
        kw, (out_size, in_size), dtype=jnp.float32, minval=-bound, maxval=bound
    )
    # bias / threshold exist on the module but are unused in forward.

    ok = True

    # --- Test 1: module default mask (all ones) -----------------------------
    mask = jnp.ones((in_size,), dtype=jnp.float32)
    w_t, idx, k_pad = prepare_masked_mlp(weight, mask)
    out = jax.block_until_ready(masked_mlp_forward(x, w_t, idx, k_pad))
    ref = x @ weight.T                               # f32 PyTorch reference
    ok &= out.shape == (B, out_size)
    ok &= bool(jnp.allclose(out, ref, atol=5e-2, rtol=5e-2))   # bf16 compute tol

    # --- Test 2: sparse mask (true column prune; NaN in a pruned column) ----
    mask2_np = (np.arange(in_size) % 5 != 0).astype(np.float32)  # keeps 204
    mask2 = jnp.asarray(mask2_np)
    x2 = x.at[:, 0].set(jnp.nan)          # column 0 is pruned -> must vanish
    w_t2, idx2, k_pad2 = prepare_masked_mlp(weight, mask2)
    out2 = jax.block_until_ready(masked_mlp_forward(x2, w_t2, idx2, k_pad2))
    keep = np.nonzero(mask2_np != 0)[0]
    ref2 = x2[:, keep] @ weight[:, keep].T
    ok &= out2.shape == (B, out_size)
    ok &= not bool(jnp.any(jnp.isnan(out2)))
    ok &= bool(jnp.allclose(out2, ref2, atol=5e-2, rtol=5e-2))

    if ok:
        print("KERNEL_OK")
</pallas_src>

<mosaic_0001>
module attributes {stable_mosaic.version = 11 : i64} {
  func.func @masked_mm_kernel(%arg0: memref<8x256xbf16, #tpu.memory_space<vmem>>, %arg1: memref<256x128xbf16, #tpu.memory_space<vmem>>, %arg2: memref<8x128xf32, #tpu.memory_space<vmem>>) attributes {dimension_semantics = [], scalar_prefetch = 0 : i64, scratch_operands = 0 : i64, tpu.core_type = #tpu.core_type<tc>} {
    %c0 = arith.constant 0 : index
    %c0_0 = arith.constant 0 : index
    %0 = vector.load %arg0[%c0, %c0_0] : memref<8x256xbf16, #tpu.memory_space<vmem>>, vector<8x256xbf16>
    %c0_1 = arith.constant 0 : index
    %c0_2 = arith.constant 0 : index
    %1 = vector.load %arg1[%c0_1, %c0_2] : memref<256x128xbf16, #tpu.memory_space<vmem>>, vector<256x128xbf16>
    %cst = arith.constant dense<0.000000e+00> : vector<8x128xf32>
    %2 = tpu.matmul %0, %1, %cst {dimension_numbers = #tpu.dot_dimension_numbers<[1], [0], [0], [1], [0, 0, 1, 1], [], []>} : vector<8x256xbf16>, vector<256x128xbf16>, vector<8x128xf32> -> vector<8x128xf32>
    %c0_3 = arith.constant 0 : index
    %c0_4 = arith.constant 0 : index
    %3 = vector.load %arg2[%c0_3, %c0_4] : memref<8x128xf32, #tpu.memory_space<vmem>>, vector<8x128xf32>
    tpu.vector_store %arg2[%c0_3, %c0_4], %2 {strides = array<i32>} : memref<8x128xf32, #tpu.memory_space<vmem>>, vector<8x128xf32>,
    return
  }
}

</mosaic_0001>

<llo_original>
// kernel: tpu_custom_call.1
$region0: #{tpu_custom_call.1}
  #allocation0 [shape = 'u32[]', space=smem, size = 0x4, offset = 0x4, fixed_abs, tag = 'smem constant byte address 0x4 - core index']
  #allocation1 [shape = 'u32[144,128]{1,0:T(1,128)}', space=vmem, size = 0x12000, scoped, tag = 'internal scratch']
  %s0 = inlined_call_operand.hbm [shape: bf16[8,256], index: 0, kind: input, shape index: {}]
  %s1 = inlined_call_operand.hbm [shape: bf16[256,128], index: 1, kind: input, shape index: {}]
  %s2 = inlined_call_operand.hbm [shape: f32[8,128], index: 2, kind: output, shape index: {}]
  %s3 = sld [smem:[#allocation0]]
  $region26: #{tpu_custom_call.1} parent=0
    _
  %s5 = ssub.s32 1, %s3
  %s6 = scalar_select 0, %s5, %s3
  $region1: #{tpu_custom_call.1} parent=0
    #allocation2 [shape = 'u8[4096]{0}', space=vmem, size = 0x1000, scoped, tag = 'input window, operand 0, single buffered']
    #allocation3 [shape = 's32[1]{0}', space=sflag, size = 0x4, scoped, tag = 'scoped memory for tpu_custom_call.1']
    #allocation4 [shape = 's32[1]{0}', space=sflag, size = 0x4, scoped, tag = 'scoped memory for tpu_custom_call.1']
    #allocation5 [shape = 'u8[65536]{0}', space=vmem, size = 0x10000, scoped, tag = 'input window, operand 1, single buffered']
    #allocation6 [shape = 's32[1]{0}', space=sflag, size = 0x4, scoped, tag = 'scoped memory for tpu_custom_call.1']
    #allocation7 [shape = 'u8[4096]{0}', space=vmem, size = 0x1000, scoped, tag = 'output window, operand 0, single buffered']
    %7 = vsyncpa [#allocation3], 0
    %8 = vsyncpa [#allocation6], 0
    %9 = vsyncpa [#allocation4], 0
    // Predicated region
    $region2: #{tpu_custom_call.1} parent=1 // pred_check
      _
    $region3: #{tpu_custom_call.1} parent=1 // pred_check_branch
      %11 = sbr.rel (0) target = $region5
    $region4: #{tpu_custom_call.1} parent=1 // pred_region
      %s13 = ssub.s32 128, 128
      %14 = vsyncadd [#allocation3], %s13
      %s16 = sshll.u32 [#allocation2], 4
      %s17 = int_to_ptr.vmem [resolvable:$true] %s16
      %19 = dma.hbm_to_vmem [thread:$0]  %s0, 128, %s17, [#allocation3]
    $region5: #{tpu_custom_call.1} parent=1 // pred_fallthru
      _
    // Predicated region
    $region6: #{tpu_custom_call.1} parent=1 // pred_check
      _
    $region7: #{tpu_custom_call.1} parent=1 // pred_check_branch
      %21 = sbr.rel (0) target = $region9
    $region8: #{tpu_custom_call.1} parent=1 // pred_region
      %s23 = ssub.s32 2048, 2048
      %24 = vsyncadd [#allocation6], %s23
      %s25 = sshll.u32 [#allocation5], 4
      %s26 = int_to_ptr.vmem [resolvable:$true] %s25
      %31 = dma.hbm_to_vmem [thread:$0]  %s1, 2048, %s26, [#allocation6], 64, 64, 4
    $region9: #{tpu_custom_call.1} parent=1 // pred_fallthru
      _
    // Predicated region
    $region10: #{tpu_custom_call.1} parent=1 // pred_check
      _
    $region11: #{tpu_custom_call.1} parent=1 // pred_check_branch
      %33 = sbr.rel (0) target = $region13
    $region12: #{tpu_custom_call.1} parent=1 // pred_region
      %34 = dma.done [#allocation3], 128
    $region13: #{tpu_custom_call.1} parent=1 // pred_fallthru
      _
    // Predicated region
    $region14: #{tpu_custom_call.1} parent=1 // pred_check
      _
    $region15: #{tpu_custom_call.1} parent=1 // pred_check_branch
      %36 = sbr.rel (0) target = $region17
    $region16: #{tpu_custom_call.1} parent=1 // pred_region
      %37 = dma.done [#allocation6], 2048
    $region17: #{tpu_custom_call.1} parent=1 // pred_fallthru
      _
    %v39 = vld [vmem:[#allocation2] sm:$0xff]
    %v40 = vld [vmem:[#allocation5] sm:$0xf]
    %v41 = vld [vmem:[#allocation5 + $0x4] sm:$0xf]
    %v42 = vld [vmem:[#allocation5 + $0x8] sm:$0xf]
    %v43 = vld [vmem:[#allocation5 + $0xc] sm:$0xf]
    %v44 = vld [vmem:[#allocation5 + $0x10] sm:$0xf]
    %v45 = vld [vmem:[#allocation5 + $0x14] sm:$0xf]
    %v46 = vld [vmem:[#allocation5 + $0x18] sm:$0xf]
    %v47 = vld [vmem:[#allocation5 + $0x1c] sm:$0xf]
    %v48 = vld [vmem:[#allocation5 + $0x20] sm:$0xf]
    %v49 = vld [vmem:[#allocation5 + $0x24] sm:$0xf]
    %v50 = vld [vmem:[#allocation5 + $0x28] sm:$0xf]
    %v51 = vld [vmem:[#allocation5 + $0x2c] sm:$0xf]
    %v52 = vld [vmem:[#allocation5 + $0x30] sm:$0xf]
    %v53 = vld [vmem:[#allocation5 + $0x34] sm:$0xf]
    %v54 = vld [vmem:[#allocation5 + $0x38] sm:$0xf]
    %v55 = vld [vmem:[#allocation5 + $0x3c] sm:$0xf]
    %v56 = vld [vmem:[#allocation5 + $0x40] sm:$0xf]
    %v57 = vld [vmem:[#allocation5 + $0x44] sm:$0xf]
    %v58 = vld [vmem:[#allocation5 + $0x48] sm:$0xf]
    %v59 = vld [vmem:[#allocation5 + $0x4c] sm:$0xf]
    %v60 = vld [vmem:[#allocation5 + $0x50] sm:$0xf]
    %v61 = vld [vmem:[#allocation5 + $0x54] sm:$0xf]
    %v62 = vld [vmem:[#allocation5 + $0x58] sm:$0xf]
    %v63 = vld [vmem:[#allocation5 + $0x5c] sm:$0xf]
    %v64 = vld [vmem:[#allocation5 + $0x60] sm:$0xf]
    %v65 = vld [vmem:[#allocation5 + $0x64] sm:$0xf]
    %v66 = vld [vmem:[#allocation5 + $0x68] sm:$0xf]
    %v67 = vld [vmem:[#allocation5 + $0x6c] sm:$0xf]
    %v68 = vld [vmem:[#allocation5 + $0x70] sm:$0xf]
    %v69 = vld [vmem:[#allocation5 + $0x74] sm:$0xf]
    %v70 = vld [vmem:[#allocation5 + $0x78] sm:$0xf]
    %v71 = vld [vmem:[#allocation5 + $0x7c] sm:$0xf]
    %v73 = vunpack.c.l.b16 %v39
    %v74 = vunpack.c.h.b16 %v39
    %v75 = vpack.c.b16 %v73, %v73
    %v76 = vpack.c.b16 %v74, %v74
    %v111 = vunpack.c.l.b16 %v40
    %v112 = vunpack.c.l.b16 %v41
    %v113 = vunpack.c.l.b16 %v42
    %v114 = vunpack.c.l.b16 %v43
    %v115 = vunpack.c.l.b16 %v44
    %v116 = vunpack.c.l.b16 %v45
    %v117 = vunpack.c.l.b16 %v46
    %v118 = vunpack.c.l.b16 %v47
    %v119 = vunpack.c.l.b16 %v48
    %v120 = vunpack.c.l.b16 %v49
    %v121 = vunpack.c.l.b16 %v50
    %v122 = vunpack.c.l.b16 %v51
    %v123 = vunpack.c.l.b16 %v52
    %v124 = vunpack.c.l.b16 %v53
    %v125 = vunpack.c.l.b16 %v54
    %v126 = vunpack.c.l.b16 %v55
    %v127 = vunpack.c.l.b16 %v56
    %v128 = vunpack.c.l.b16 %v57
    %v129 = vunpack.c.l.b16 %v58
    %v130 = vunpack.c.l.b16 %v59
    %v131 = vunpack.c.l.b16 %v60
    %v132 = vunpack.c.l.b16 %v61
    %v133 = vunpack.c.l.b16 %v62
    %v134 = vunpack.c.l.b16 %v63
    %v135 = vunpack.c.l.b16 %v64
    %v136 = vunpack.c.l.b16 %v65
    %v137 = vunpack.c.l.b16 %v66
    %v138 = vunpack.c.l.b16 %v67
    %v139 = vunpack.c.l.b16 %v68
    %v140 = vunpack.c.l.b16 %v69
    %v141 = vunpack.c.l.b16 %v70
    %v142 = vunpack.c.l.b16 %v71
    %v143 = vpack.c.b16 %v112, %v111
    %v144 = vpack.c.b16 %v114, %v113
    %v145 = vpack.c.b16 %v116, %v115
    %v146 = vpack.c.b16 %v118, %v117
    %v147 = vpack.c.b16 %v120, %v119
    %v148 = vpack.c.b16 %v122, %v121
    %v149 = vpack.c.b16 %v124, %v123
    %v150 = vpack.c.b16 %v126, %v125
    %v151 = vpack.c.b16 %v128, %v127
    %v152 = vpack.c.b16 %v130, %v129
    %v153 = vpack.c.b16 %v132, %v131
    %v154 = vpack.c.b16 %v134, %v133
    %v155 = vpack.c.b16 %v136, %v135
    %v156 = vpack.c.b16 %v138, %v137
    %v157 = vpack.c.b16 %v140, %v139
    %v158 = vpack.c.b16 %v142, %v141
    %175 = vmatprep.subr.bf16.mxu0 0
    %176 = vmatpush1.bf16.msra.mxu0 %v143
    %177 = vmatprep.subr.bf16.mxu0 0
    %178 = vmatpush1.bf16.msra.mxu0 %v144
    %179 = vmatprep.subr.bf16.mxu0 0
    %180 = vmatpush1.bf16.msra.mxu0 %v145
    %181 = vmatprep.subr.bf16.mxu0 0
    %182 = vmatpush1.bf16.msra.mxu0 %v146
    %183 = vmatprep.subr.bf16.mxu0 0
    %184 = vmatpush1.bf16.msra.mxu0 %v147
    %185 = vmatprep.subr.bf16.mxu0 0
    %186 = vmatpush1.bf16.msra.mxu0 %v148
    %187 = vmatprep.subr.bf16.mxu0 0
    %188 = vmatpush1.bf16.msra.mxu0 %v149
    %189 = vmatprep.subr.bf16.mxu0 0
    %190 = vmatpush1.bf16.msra.mxu0 %v150
    %191 = vmatprep.subr.bf16.mxu0 0
    %192 = vmatpush1.bf16.msra.mxu0 %v151
    %193 = vmatprep.subr.bf16.mxu0 0
    %194 = vmatpush1.bf16.msra.mxu0 %v152
    %195 = vmatprep.subr.bf16.mxu0 0
    %196 = vmatpush1.bf16.msra.mxu0 %v153
    %197 = vmatprep.subr.bf16.mxu0 0
    %198 = vmatpush1.bf16.msra.mxu0 %v154
    %199 = vmatprep.subr.bf16.mxu0 0
    %200 = vmatpush1.bf16.msra.mxu0 %v155
    %201 = vmatprep.subr.bf16.mxu0 0
    %202 = vmatpush1.bf16.msra.mxu0 %v156
    %203 = vmatprep.subr.bf16.mxu0 0
    %204 = vmatpush1.bf16.msra.mxu0 %v157
    %205 = vmatprep.subr.bf16.mxu0 0
    %206 = vmatpush1.bf16.msra.mxu0 %v158
    %207 = vmatprep.mubr.bf16.mxu0 %v76
    %208 = vmatmul.mubr.bf16.gmra.mrb[0].mxu0 %v75
    %v209 = vpop.f32.mrb[0].mxu0
    %v210 = vadd.f32 0.0, %v209
    %v211 = vpop.f32.mrb[0].mxu0
    %v212 = vpop.f32.mrb[0].mxu0
    %v213 = vpop.f32.mrb[0].mxu0
    %214 = vdwg.mxu0
    %215 = vst [vmem:[#allocation7] sm:$0xff] %v210
    // Predicated region
    $region18: #{tpu_custom_call.1} parent=1 // pred_check
      _
    $region19: #{tpu_custom_call.1} parent=1 // pred_check_branch
      %217 = sbr.rel (0) target = $region21
    $region20: #{tpu_custom_call.1} parent=1 // pred_region
      %s219 = ssub.s32 128, 128
      %220 = vsyncadd [#allocation4], %s219
      %s222 = sshll.u32 [#allocation7], 4
      %s223 = int_to_ptr.vmem [resolvable:$true] %s222
      %225 = dma.vmem_to_hbm [thread:$0]  %s223, 128, %s2, [#allocation4]
    $region21: #{tpu_custom_call.1} parent=1 // pred_fallthru
      _
    // Predicated region
    $region22: #{tpu_custom_call.1} parent=1 // pred_check
      _
    $region23: #{tpu_custom_call.1} parent=1 // pred_check_branch
      %227 = sbr.rel (0) target = $region25
    $region24: #{tpu_custom_call.1} parent=1 // pred_region
      %228 = dma.done [#allocation4], 128
    $region25: #{tpu_custom_call.1} parent=1 // pred_fallthru
      _
    %229 = vsyncpa [#allocation3], 1
    %230 = vsyncpa [#allocation6], 1
    %231 = vsyncpa [#allocation4], 1

</llo_original>
